<compile_context>
chip_gen: v7x
topology: tpu7x:2x2x1
jax: 0.10.0
libtpu: 0.0.40
codegen_flags: <defaults>
</compile_context>

<pallas_src>
import math

import jax
import jax.numpy as jnp
from jax.experimental import pallas as pl
from jax.experimental.pallas import tpu as pltpu


def _round_up(x, m):
    return ((x + m - 1) // m) * m


# -----------------------------------------------------------------------------
# Pallas kernel: fused Detector branch (1x1 convs + activations), channel-major
# -----------------------------------------------------------------------------
def _detector_kernel(x_ref, w_ref, b_ref, score_ref, geo_ref):
    # x_ref:     (1, 32, T)  channel-major tile of shared features (T lanes)
    # w_ref:     (6, 32)     fused 1x1-conv weights, rows = [score|loc0..3|angle]
    # b_ref:     (6, 1)      fused biases (f32)
    # score_ref: (1, 1, T)   sigmoid(conv_score(x))
    # geo_ref:   (1, 5, T)   [sigmoid(conv_loc)*512 | (sigmoid(conv_angle)-.5)*pi/2]
    x = x_ref[0]                                                     # (32, T)
    w = w_ref[...]                                                   # (6, 32)
    b = b_ref[...]                                                   # (6, 1) f32

    # Score head.
    z_s = jnp.dot(w[0:1, :], x, preferred_element_type=jnp.float32)  # (1, T)
    score_ref[0] = jax.nn.sigmoid(z_s + b[0:1, :]).astype(score_ref.dtype)

    # Geometry head (4 loc channels + 1 angle channel).  Post-sigmoid
    # scale/offset are compile-time constants baked into the kernel:
    #   scale = [512, 512, 512, 512, pi/2],  offset = [0, 0, 0, 0, -pi/4]
    z_g = jnp.dot(w[1:6, :], x, preferred_element_type=jnp.float32)  # (5, T)
    s_g = jax.nn.sigmoid(z_g + b[1:6, :])                            # f32, EUP
    ch = jax.lax.broadcasted_iota(jnp.int32, (5, 1), 0)
    scale = jnp.where(ch == 4, math.pi / 2.0, 512.0).astype(jnp.float32)
    offset = jnp.where(ch == 4, -math.pi / 4.0, 0.0).astype(jnp.float32)
    geo_ref[0] = (s_g * scale + offset).astype(geo_ref.dtype)


def detector_pallas(shared_features_nchw, w_fused, b_fused, *, tile_hw=8192):
    """Run the fused Detector branch.

    shared_features_nchw: (N, 32, H, W) float32 or bfloat16
    w_fused:              (6, 32) rows = [score, loc0..3, angle]
                          (PyTorch Conv2d (out, in, 1, 1) weights, squeezed)
    b_fused:              (6,)
    Returns (score (N,1,H,W) f32, geometry (N,5,H,W) f32) in NCHW.
    """
    n, c, h, w = shared_features_nchw.shape
    assert c == 32, "Detector expects 32 input channels"
    hw = h * w

    # Channel-major view: free reshape of NCHW, no transpose / HBM round trip.
    x = shared_features_nchw.reshape(n, c, hw)

    # Lane-aligned tile over the pixel axis.  No padding: grid uses cdiv and
    # Pallas masks the partial last block (OOB lanes are never reused and
    # their writes are dropped).  When N == 1, split HW into >= 2 tiles so
    # both v7x TensorCores get work on the "parallel" grid axes.
    tile = min(_round_up(tile_hw, 128), _round_up(hw, 128))
    if n == 1:
        tile = min(tile, _round_up(pl.cdiv(hw, 2), 128))
    tile = max(tile, 128)
    grid = (n, pl.cdiv(hw, tile))

    # bf16 features hit the MXU natively; accumulation is f32 via
    # preferred_element_type, and bias/sigmoid/scale run in f32.
    w_k = w_fused.astype(x.dtype)
    b2d = b_fused.reshape(6, 1).astype(jnp.float32)

    score, geometry = pl.pallas_call(
        _detector_kernel,
        out_shape=(
            jax.ShapeDtypeStruct((n, 1, hw), jnp.float32),
            jax.ShapeDtypeStruct((n, 5, hw), jnp.float32),
        ),
        grid_spec=pltpu.PrefetchScalarGridSpec(
            num_scalar_prefetch=0,
            grid=grid,
            in_specs=[
                pl.BlockSpec((1, c, tile), lambda i, j: (i, 0, j)),  # features
                pl.BlockSpec((6, c), lambda i, j: (0, 0)),           # weights
                pl.BlockSpec((6, 1), lambda i, j: (0, 0)),           # bias
            ],
            out_specs=[
                pl.BlockSpec((1, 1, tile), lambda i, j: (i, 0, j)),  # score
                pl.BlockSpec((1, 5, tile), lambda i, j: (i, 0, j)),  # geometry
            ],
        ),
        compiler_params=pltpu.CompilerParams(
            dimension_semantics=("parallel", "parallel"),
        ),
    )(x, w_k, b2d)

    # Free reshapes back to NCHW; no slice copies, no pixel-axis trimming.
    return score.reshape(n, 1, h, w), geometry.reshape(n, 5, h, w)


# -----------------------------------------------------------------------------
# FOTSModel forward (eval path) around the Pallas Detector kernel
# -----------------------------------------------------------------------------
def fots_forward_eval(shared_features, params):
    """Eval-mode FOTS forward.

    Mirrors FOTSModel.forward when no boxes are detected:
        returns (per_pixel_preds, loc_features, (None, None),
                 pred_bboxes=[], pred_mapping=[], indices=None)
    """
    per_pixel_preds, loc_features = detector_pallas(
        shared_features, params["w_fused"], params["b_fused"]
    )
    # TODO(synk): Toolbox.detect / ROIRotate / CRNN recognizer are undefined in
    # the reference; reproduce the "no detections" early-return path.
    pred_bboxes, pred_mapping = [], []
    return (per_pixel_preds, loc_features, (None, None),
            pred_bboxes, pred_mapping, None)


def init_detector_params(key):
    """Deterministic init of Detector 1x1-conv params fused as rows of (6, 32)."""
    k1, k2, k3, k4, k5, k6 = jax.random.split(key, 6)
    # PyTorch Conv2d weights (out, in, 1, 1) squeezed; row order:
    # [score, loc0, loc1, loc2, loc3, angle]
    w_score = jax.random.normal(k1, (1, 32), jnp.float32) * 0.1
    w_loc = jax.random.normal(k2, (4, 32), jnp.float32) * 0.1
    w_angle = jax.random.normal(k3, (1, 32), jnp.float32) * 0.1
    b_score = jax.random.normal(k4, (1,), jnp.float32) * 0.1
    b_loc = jax.random.normal(k5, (4,), jnp.float32) * 0.1
    b_angle = jax.random.normal(k6, (1,), jnp.float32) * 0.1

    w_fused = jnp.concatenate([w_score, w_loc, w_angle], axis=0)  # (6, 32)
    b_fused = jnp.concatenate([b_score, b_loc, b_angle], axis=0)  # (6,)
    return {"w_fused": w_fused, "b_fused": b_fused}


def _reference_detector(x_nchw, params):
    """Pure-JAX reference of the Detector branch (for correctness check)."""
    n, c, h, w = x_nchw.shape
    x_flat = jnp.transpose(x_nchw.astype(jnp.float32), (0, 2, 3, 1)).reshape(-1, c)
    z = x_flat @ params["w_fused"].T + params["b_fused"][None, :]
    s = jax.nn.sigmoid(z)
    score = s[:, 0:1]
    geo = jnp.concatenate(
        [s[:, 1:5] * 512.0, (s[:, 5:6] - 0.5) * (math.pi / 2.0)], axis=-1
    )
    score = jnp.transpose(score.reshape(n, h, w, 1), (0, 3, 1, 2))
    geo = jnp.transpose(geo.reshape(n, h, w, 5), (0, 3, 1, 2))
    return score, geo


if __name__ == "__main__":
    key = jax.random.PRNGKey(0)
    k_params, k_x, k_x2 = jax.random.split(key, 3)

    params = init_detector_params(k_params)

    # Shared feature map (output of SharedConvolutions): N=2, C=32, H=W=16.
    shared_features = jax.random.normal(k_x, (2, 32, 16, 16), jnp.float32)

    out = fots_forward_eval(shared_features, params)
    per_pixel_preds, loc_features = out[0], out[1]
    jax.block_until_ready(per_pixel_preds)
    jax.block_until_ready(loc_features)

    # Correctness vs pure-JAX reference (f32 path).
    ref_score, ref_geo = _reference_detector(shared_features, params)
    assert per_pixel_preds.shape == (2, 1, 16, 16)
    assert loc_features.shape == (2, 5, 16, 16)
    assert jnp.allclose(per_pixel_preds, ref_score, atol=1e-5, rtol=1e-5)
    assert jnp.allclose(loc_features, ref_geo, atol=1e-4, rtol=1e-5)

    # Non-tile-divisible spatial size exercises the partial-last-block path
    # (no wrapper padding; 400 pixels with a 256-lane tile, N=1 -> 2 tiles).
    shared_odd = jax.random.normal(k_x2, (1, 32, 20, 20), jnp.float32)
    s_odd, g_odd = detector_pallas(
        shared_odd, params["w_fused"], params["b_fused"], tile_hw=256
    )
    r_s, r_g = _reference_detector(shared_odd, params)
    assert s_odd.shape == (1, 1, 20, 20) and g_odd.shape == (1, 5, 20, 20)
    assert jnp.allclose(s_odd, r_s, atol=1e-5, rtol=1e-5)
    assert jnp.allclose(g_odd, r_g, atol=1e-4, rtol=1e-5)

    # bf16 shared features (backbone emits bf16): tolerance-check against the
    # f32 reference (loose bounds; geometry is scaled by 512).
    s_bf, g_bf = detector_pallas(
        shared_features.astype(jnp.bfloat16), params["w_fused"], params["b_fused"]
    )
    jax.block_until_ready(g_bf)
    assert bool(jnp.all(jnp.isfinite(s_bf))) and bool(jnp.all(jnp.isfinite(g_bf)))
    assert bool(jnp.max(jnp.abs(s_bf - ref_score)) < 0.05)
    assert bool(jnp.max(jnp.abs(g_bf - ref_geo)) < 8.0)

    print("KERNEL_OK")
</pallas_src>

<mosaic_0001>
module attributes {stable_mosaic.version = 11 : i64} {
  func.func @_detector_kernel(%arg0: i32, %arg1: i32, %arg2: memref<1x32x256xf32, #tpu.memory_space<vmem>>, %arg3: memref<6x32xf32, #tpu.memory_space<vmem>>, %arg4: memref<6x1xf32, #tpu.memory_space<vmem>>, %arg5: memref<1x1x256xf32, #tpu.memory_space<vmem>>, %arg6: memref<1x5x256xf32, #tpu.memory_space<vmem>>) attributes {dimension_semantics = [#tpu.dimension_semantics<parallel>, #tpu.dimension_semantics<parallel>], iteration_bounds = array<i64: 2, 1>, scalar_prefetch = 0 : i64, scratch_operands = 0 : i64, tpu.core_type = #tpu.core_type<tc>, window_params = [{transform_indices = @transform_0, window_bounds = array<i64: 1, 32, 256>}, {pipeline_mode = #tpu.pipeline_mode<synchronous>, transform_indices = @transform_1, window_bounds = array<i64: 6, 32>}, {pipeline_mode = #tpu.pipeline_mode<synchronous>, transform_indices = @transform_2, window_bounds = array<i64: 6, 1>}, {transform_indices = @transform_3, window_bounds = array<i64: 1, 1, 256>}, {transform_indices = @transform_4, window_bounds = array<i64: 1, 5, 256>}]} {
    %c0 = arith.constant 0 : index
    %c0_0 = arith.constant 0 : index
    %c0_1 = arith.constant 0 : index
    %0 = vector.load %arg2[%c0, %c0_0, %c0_1] : memref<1x32x256xf32, #tpu.memory_space<vmem>>, vector<1x32x256xf32>
    %1 = vector.shape_cast %0 : vector<1x32x256xf32> to vector<32x256xf32>
    %c0_2 = arith.constant 0 : index
    %c0_3 = arith.constant 0 : index
    %2 = vector.load %arg3[%c0_2, %c0_3] : memref<6x32xf32, #tpu.memory_space<vmem>>, vector<6x32xf32>
    %c0_4 = arith.constant 0 : index
    %c0_5 = arith.constant 0 : index
    %3 = vector.load %arg4[%c0_4, %c0_5] : memref<6x1xf32, #tpu.memory_space<vmem>>, vector<6x1xf32>
    %4 = vector.extract_strided_slice %2 {offsets = [0, 0], sizes = [1, 32], strides = [1, 1]} : vector<6x32xf32> to vector<1x32xf32>
    %cst = arith.constant dense<0.000000e+00> : vector<1x256xf32>
    %5 = tpu.matmul %4, %1, %cst {dimension_numbers = #tpu.dot_dimension_numbers<[1], [0], [0], [1], [0, 0, 1, 1], [], []>} : vector<1x32xf32>, vector<32x256xf32>, vector<1x256xf32> -> vector<1x256xf32>
    %6 = vector.extract_strided_slice %3 {offsets = [0, 0], sizes = [1, 1], strides = [1, 1]} : vector<6x1xf32> to vector<1x1xf32>
    %7 = vector.broadcast %6 : vector<1x1xf32> to vector<1x256xf32>
    %8 = arith.addf %5, %7 : vector<1x256xf32>
    %9 = arith.negf %8 : vector<1x256xf32>
    %10 = math.exp %9 : vector<1x256xf32>
    %cst_6 = arith.constant 1.000000e+00 : f32
    %11 = vector.broadcast %cst_6 : f32 to vector<1x256xf32>
    %12 = arith.addf %11, %10 : vector<1x256xf32>
    %13 = arith.divf %11, %12 : vector<1x256xf32>
    %c0_7 = arith.constant 0 : index
    %c0_8 = arith.constant 0 : index
    %c0_9 = arith.constant 0 : index
    %14 = vector.load %arg5[%c0_7, %c0_8, %c0_9] : memref<1x1x256xf32, #tpu.memory_space<vmem>>, vector<1x1x256xf32>
    %15 = vector.shape_cast %14 : vector<1x1x256xf32> to vector<1x256xf32>
    %16 = vector.shape_cast %13 : vector<1x256xf32> to vector<1x1x256xf32>
    tpu.vector_store %arg5[%c0_7, %c0_8, %c0_9], %16 {strides = array<i32>} : memref<1x1x256xf32, #tpu.memory_space<vmem>>, vector<1x1x256xf32>,
    %17 = vector.extract_strided_slice %2 {offsets = [1, 0], sizes = [5, 32], strides = [1, 1]} : vector<6x32xf32> to vector<5x32xf32>
    %cst_10 = arith.constant dense<0.000000e+00> : vector<5x256xf32>
    %18 = tpu.matmul %17, %1, %cst_10 {dimension_numbers = #tpu.dot_dimension_numbers<[1], [0], [0], [1], [0, 0, 1, 1], [], []>} : vector<5x32xf32>, vector<32x256xf32>, vector<5x256xf32> -> vector<5x256xf32>
    %19 = vector.extract_strided_slice %3 {offsets = [1, 0], sizes = [5, 1], strides = [1, 1]} : vector<6x1xf32> to vector<5x1xf32>
    %20 = vector.broadcast %19 : vector<5x1xf32> to vector<5x256xf32>
    %21 = arith.addf %18, %20 : vector<5x256xf32>
    %22 = arith.negf %21 : vector<5x256xf32>
    %23 = math.exp %22 : vector<5x256xf32>
    %cst_11 = arith.constant 1.000000e+00 : f32
    %24 = vector.broadcast %cst_11 : f32 to vector<5x256xf32>
    %25 = arith.addf %24, %23 : vector<5x256xf32>
    %26 = arith.divf %24, %25 : vector<5x256xf32>
    %27 = tpu.iota {dimensions = array<i32: 0>} : vector<5x1xi32>
    %c4_i32 = arith.constant 4 : i32
    %28 = vector.broadcast %c4_i32 : i32 to vector<5x1xi32>
    %29 = arith.cmpi eq, %27, %28 : vector<5x1xi32>
    %cst_12 = arith.constant 1.57079637 : f32
    %cst_13 = arith.constant 5.120000e+02 : f32
    %30 = vector.broadcast %cst_12 : f32 to vector<5x1xf32>
    %31 = vector.broadcast %cst_13 : f32 to vector<5x1xf32>
    %32 = arith.select %29, %30, %31 : vector<5x1xi1>, vector<5x1xf32>
    %c4_i32_14 = arith.constant 4 : i32
    %33 = vector.broadcast %c4_i32_14 : i32 to vector<5x1xi32>
    %34 = arith.cmpi eq, %27, %33 : vector<5x1xi32>
    %cst_15 = arith.constant -0.785398185 : f32
    %cst_16 = arith.constant 0.000000e+00 : f32
    %35 = vector.broadcast %cst_15 : f32 to vector<5x1xf32>
    %36 = vector.broadcast %cst_16 : f32 to vector<5x1xf32>
    %37 = arith.select %34, %35, %36 : vector<5x1xi1>, vector<5x1xf32>
    %38 = vector.broadcast %32 : vector<5x1xf32> to vector<5x256xf32>
    %39 = arith.mulf %26, %38 : vector<5x256xf32>
    %40 = vector.broadcast %37 : vector<5x1xf32> to vector<5x256xf32>
    %41 = arith.addf %39, %40 : vector<5x256xf32>
    %c0_17 = arith.constant 0 : index
    %c0_18 = arith.constant 0 : index
    %c0_19 = arith.constant 0 : index
    %42 = vector.load %arg6[%c0_17, %c0_18, %c0_19] : memref<1x5x256xf32, #tpu.memory_space<vmem>>, vector<1x5x256xf32>
    %43 = vector.shape_cast %42 : vector<1x5x256xf32> to vector<5x256xf32>
    %44 = vector.shape_cast %41 : vector<5x256xf32> to vector<1x5x256xf32>
    tpu.vector_store %arg6[%c0_17, %c0_18, %c0_19], %44 {strides = array<i32>} : memref<1x5x256xf32, #tpu.memory_space<vmem>>, vector<1x5x256xf32>,
    return
  }
  func.func @transform_0(%arg0: i32, %arg1: i32) -> (i32, i32, i32) {
    %c0_i32 = arith.constant 0 : i32
    %c0_i32_0 = arith.constant 0 : i32
    return %arg0, %c0_i32, %arg1 : i32, i32, i32
  }
  func.func @transform_1(%arg0: i32, %arg1: i32) -> (i32, i32) {
    %c0_i32 = arith.constant 0 : i32
    %c0_i32_0 = arith.constant 0 : i32
    %c0_i32_1 = arith.constant 0 : i32
    return %c0_i32, %c0_i32_0 : i32, i32
  }
  func.func @transform_2(%arg0: i32, %arg1: i32) -> (i32, i32) {
    %c0_i32 = arith.constant 0 : i32
    %c0_i32_0 = arith.constant 0 : i32
    %c0_i32_1 = arith.constant 0 : i32
    return %c0_i32, %c0_i32_0 : i32, i32
  }
  func.func @transform_3(%arg0: i32, %arg1: i32) -> (i32, i32, i32) {
    %c0_i32 = arith.constant 0 : i32
    %c0_i32_0 = arith.constant 0 : i32
    return %arg0, %c0_i32, %arg1 : i32, i32, i32
  }
  func.func @transform_4(%arg0: i32, %arg1: i32) -> (i32, i32, i32) {
    %c0_i32 = arith.constant 0 : i32
    %c0_i32_0 = arith.constant 0 : i32
    return %arg0, %c0_i32, %arg1 : i32, i32, i32
  }
}

</mosaic_0001>

<llo_original>
// kernel: tpu_custom_call.1
$region0: #{tpu_custom_call.1}
  #allocation0 [shape = 'u32[]', space=smem, size = 0x4, offset = 0x4, fixed_abs, tag = 'smem constant byte address 0x4 - core index']
  #allocation1 [shape = 'u32[144,128]{1,0:T(1,128)}', space=vmem, size = 0x12000, scoped, tag = 'internal scratch']
  %s0 = inlined_call_operand.hbm [shape: f32[2,32,256], index: 0, kind: input, shape index: {}]
  %s1 = inlined_call_operand.vmem [shape: f32[6,32], index: 1, kind: input, shape index: {}]
  %s2 = inlined_call_operand.vmem [shape: f32[6,1], index: 2, kind: input, shape index: {}]
  %s3 = inlined_call_operand.hbm [shape: f32[2,1,256], index: 3, kind: output, shape index: {0}]
  %s4 = inlined_call_operand.vmem [shape: f32[2,5,256], index: 4, kind: output, shape index: {1}]
  %5 = xla_tuple %s3, %s4
  %s6 = sld [smem:[#allocation0]]
  $region57: #{tpu_custom_call.1} parent=0
    _
  %s8 = ssub.s32 1, %s6
  %s9 = scalar_select 0, %s8, %s6
  $region1: #{tpu_custom_call.1} parent=0
    #allocation2 [shape = 'u8[65536]{0}', space=vmem, size = 0x10000, scoped, tag = 'input window, operand 0']
    #allocation3 [shape = 's32[2]{0}', space=sflag, size = 0x8, scoped, tag = 'scoped memory for tpu_custom_call.1']
    #allocation4 [shape = 's32[2]{0}', space=sflag, size = 0x8, scoped, tag = 'scoped memory for tpu_custom_call.1']
    #allocation5 [shape = 'u8[2048]{0}', space=vmem, size = 0x800, scoped, tag = 'output window, operand 0']
    %10 = vsyncpa [#allocation3], 0
    %s11 = scalar_lea.sflag [#allocation3], 1
    %12 = vsyncpa %s11, 0
    %13 = vsyncpa [#allocation4], 0
    %s14 = scalar_lea.sflag [#allocation4], 1
    %15 = vsyncpa %s14, 0
    loop: start=0, step=1, limit=4
    $region2: #{tpu_custom_call.1} parent=1 // loop_pre_header
      _
    $region3: #{tpu_custom_call.1} parent=1 // loop_header
      %s17 = sphi 0, %s21
      %p18 = scmp.ge.s32.totalorder %s17, 4
      %s24 = sphi 0, %s36
      %s25 = sphi 0, %s32
      %s26 = sphi 0, %s24
      %s27 = sphi 0, %s25
      %s28 = sphi 0, %s26
      %s29 = sphi 0, %s27
      %s41 = sphi 0, %s43
      %s44 = sphi 0, %s41
      %s45 = sphi 0, %s44
      %s61 = sphi 0, %s45
      %s65 = sphi 0, %s65
      %s67 = sphi 0, %s65
      %s68 = sphi 0, %s67
      %s82 = sphi 0, %s68
      %s86 = sphi 0, %s86
      %s88 = sphi 0, %s86
      %s89 = sphi 0, %s88
      %s103 = sphi 0, %s89
      %s111 = sphi 0, %s113
      %s114 = sphi 0, %s111
      %s115 = sphi 0, %s114
      %s131 = sphi 0, %s115
      %s139 = sphi 0, %s141
      %s142 = sphi 0, %s139
      %s143 = sphi 0, %s142
      %s159 = sphi 0, %s143
    $region4: #{tpu_custom_call.1} parent=1 // loop_header_branch
      %20 = sbr.rel (%p18) target = $region8
    $region5: #{tpu_custom_call.1} parent=1 // loop_body
      %s22 = ssub.s32 %s17, 1
      %s23 = ssub.s32 %s17, 2
      %s30 = sadd.s32 1, %s25
      %p31 = scmp.ge.s32.totalorder %s30, 1
      %s32 = scalar_select %p31, 0, %s30
      %s33 = sadd.s32 1, %s24
      %s34 = scalar_select %p31, %s33, %s24
      %p35 = scmp.ge.s32.totalorder %s34, 2
      %s36 = scalar_select %p35, 0, %s34
      %s37 = ssub.s32 %s24, %s36
      %s38 = ssub.s32 %s25, %s32
      %s39 = sor.u32 %s37, %s38
      %p40 = scmp.eq.s32.totalorder %s39, 0
      %s42 = sadd.s32 %s41, 1
      %s43 = scalar_select %p40, %s41, %s42
      %p46 = pneg %p40
      %p47 = scmp.eq.s32.totalorder %s17, 1
      %p48 = por %p46, %p47
      %p49 = scmp.ne.s32.totalorder %s41, %s44
      %p50 = scmp.eq.s32.totalorder %s17, 0
      %p51 = por %p49, %p50
      %p52 = scmp.ne.s32.totalorder %s41, %s44
      %p53 = scmp.eq.s32.totalorder %s22, 1
      %p54 = por %p52, %p53
      %p55 = scmp.ne.s32.totalorder %s44, %s45
      %p56 = scmp.eq.s32.totalorder %s22, 0
      %p57 = por %p55, %p56
      %p58 = scmp.ne.s32.totalorder %s44, %s45
      %p59 = scmp.eq.s32.totalorder %s23, 1
      %p60 = por %p58, %p59
      %p62 = scmp.ne.s32.totalorder %s45, %s61
      %p63 = scmp.eq.s32.totalorder %s23, 0
      %p64 = por %p62, %p63
      %s66 = sadd.s32 %s65, 1
      %p69 = scmp.eq.s32.totalorder %s17, 1
      %p70 = scmp.ne.s32.totalorder %s65, %s67
      %p71 = scmp.eq.s32.totalorder %s17, 0
      %p72 = por %p70, %p71
      %p73 = scmp.ne.s32.totalorder %s65, %s67
      %p74 = scmp.eq.s32.totalorder %s22, 1
      %p75 = por %p73, %p74
      %p76 = scmp.ne.s32.totalorder %s67, %s68
      %p77 = scmp.eq.s32.totalorder %s22, 0
      %p78 = por %p76, %p77
      %p79 = scmp.ne.s32.totalorder %s67, %s68
      %p80 = scmp.eq.s32.totalorder %s23, 1
      %p81 = por %p79, %p80
      %p83 = scmp.ne.s32.totalorder %s68, %s82
      %p84 = scmp.eq.s32.totalorder %s23, 0
      %p85 = por %p83, %p84
      %s87 = sadd.s32 %s86, 1
      %p90 = scmp.eq.s32.totalorder %s17, 1
      %p91 = scmp.ne.s32.totalorder %s86, %s88
      %p92 = scmp.eq.s32.totalorder %s17, 0
      %p93 = por %p91, %p92
      %p94 = scmp.ne.s32.totalorder %s86, %s88
      %p95 = scmp.eq.s32.totalorder %s22, 1
      %p96 = por %p94, %p95
      %p97 = scmp.ne.s32.totalorder %s88, %s89
      %p98 = scmp.eq.s32.totalorder %s22, 0
      %p99 = por %p97, %p98
      %p100 = scmp.ne.s32.totalorder %s88, %s89
      %p101 = scmp.eq.s32.totalorder %s23, 1
      %p102 = por %p100, %p101
      %p104 = scmp.ne.s32.totalorder %s89, %s103
      %p105 = scmp.eq.s32.totalorder %s23, 0
      %p106 = por %p104, %p105
      %s107 = ssub.s32 %s24, %s36
      %s108 = ssub.s32 %s25, %s32
      %s109 = sor.u32 %s107, %s108
      %p110 = scmp.eq.s32.totalorder %s109, 0
      %s112 = sadd.s32 %s111, 1
      %s113 = scalar_select %p110, %s111, %s112
      %p116 = pneg %p110
      %p117 = scmp.eq.s32.totalorder %s17, 1
      %p118 = por %p116, %p117
      %p119 = scmp.ne.s32.totalorder %s111, %s114
      %p120 = scmp.eq.s32.totalorder %s17, 0
      %p121 = por %p119, %p120
      %p122 = scmp.ne.s32.totalorder %s111, %s114
      %p123 = scmp.eq.s32.totalorder %s22, 1
      %p124 = por %p122, %p123
      %p125 = scmp.ne.s32.totalorder %s114, %s115
      %p126 = scmp.eq.s32.totalorder %s22, 0
      %p127 = por %p125, %p126
      %p128 = scmp.ne.s32.totalorder %s114, %s115
      %p129 = scmp.eq.s32.totalorder %s23, 1
      %p130 = por %p128, %p129
      %p132 = scmp.ne.s32.totalorder %s115, %s131
      %p133 = scmp.eq.s32.totalorder %s23, 0
      %p134 = por %p132, %p133
      %s135 = ssub.s32 %s24, %s36
      %s136 = ssub.s32 %s25, %s32
      %s137 = sor.u32 %s135, %s136
      %p138 = scmp.eq.s32.totalorder %s137, 0
      %s140 = sadd.s32 %s139, 1
      %s141 = scalar_select %p138, %s139, %s140
      %p144 = pneg %p138
      %p145 = scmp.eq.s32.totalorder %s17, 1
      %p146 = por %p144, %p145
      %p147 = scmp.ne.s32.totalorder %s139, %s142
      %p148 = scmp.eq.s32.totalorder %s17, 0
      %p149 = por %p147, %p148
      %p150 = scmp.ne.s32.totalorder %s139, %s142
      %p151 = scmp.eq.s32.totalorder %s22, 1
      %p152 = por %p150, %p151
      %p153 = scmp.ne.s32.totalorder %s142, %s143
      %p154 = scmp.eq.s32.totalorder %s22, 0
      %p155 = por %p153, %p154
      %p156 = scmp.ne.s32.totalorder %s142, %s143
      %p157 = scmp.eq.s32.totalorder %s23, 1
      %p158 = por %p156, %p157
      %p160 = scmp.ne.s32.totalorder %s143, %s159
      %p161 = scmp.eq.s32.totalorder %s23, 0
      %p162 = por %p160, %p161
      %p163 = scmp.le.s32.totalorder 1, %s17
      %p164 = scmp.lt.s32.totalorder %s17, 3
      %p165 = pnand %p163, %p164
      %p166 = pneg %p165
      // Predicated region
      $region9: #{tpu_custom_call.1} parent=5 // pred_check
        _
      $region10: #{tpu_custom_call.1} parent=5 // pred_check_branch
        %168 = sbr.rel (%p165) target = $region12
      $region11: #{tpu_custom_call.1} parent=5 // pred_region
        %s169 = ssub.s32 %s17, 1
        // Predicated region
        $region13: #{tpu_custom_call.1} parent=11 // pred_check
          %p170 = pneg %p78
        $region14: #{tpu_custom_call.1} parent=11 // pred_check_branch
          %172 = sbr.rel (%p170) target = $region16
        $region15: #{tpu_custom_call.1} parent=11 // pred_region
          _
        $region16: #{tpu_custom_call.1} parent=11 // pred_fallthru
          _
        // Predicated region
        $region17: #{tpu_custom_call.1} parent=11 // pred_check
          %p173 = pneg %p99
        $region18: #{tpu_custom_call.1} parent=11 // pred_check_branch
          %175 = sbr.rel (%p173) target = $region20
        $region19: #{tpu_custom_call.1} parent=11 // pred_region
          _
        $region20: #{tpu_custom_call.1} parent=11 // pred_fallthru
          _
      $region12: #{tpu_custom_call.1} parent=5 // pred_fallthru
        _
      %p176 = scmp.lt.s32.totalorder %s17, 2
      // Predicated region
      $region21: #{tpu_custom_call.1} parent=5 // pred_check
        %p177 = pneg %p176
      $region22: #{tpu_custom_call.1} parent=5 // pred_check_branch
        %179 = sbr.rel (%p177) target = $region24
      $region23: #{tpu_custom_call.1} parent=5 // pred_region
        // Predicated region
        $region25: #{tpu_custom_call.1} parent=23 // pred_check
          %p180 = pneg %p51
        $region26: #{tpu_custom_call.1} parent=23 // pred_check_branch
          %182 = sbr.rel (%p180) target = $region28
        $region27: #{tpu_custom_call.1} parent=23 // pred_region
          %s183 = sand.u32 %s41, 1
          %s184 = scalar_lea.sflag [#allocation3], %s183
          %s185 = sand.u32 %s41, 1
          %s186 = smul.addr %s185, 64
          %s187 = scalar_lea.vmem [#allocation2], %s186
          %s188 = smul.u32 2, %s25
          %s190 = ssub.s32 1024, 1024
          %191 = vsyncadd %s184, %s190
          %s192 = smul.addr %s24, 8
          %s193 = sadd.s32 %s188, %s192
          %s194 = smul.addr %s193, 128
          %s195 = scalar_lea.hbm %s0, %s194
          %s196 = sshll.u32 %s187, 4
          %s197 = int_to_ptr.vmem [resolvable:$true] %s196
          %202 = dma.hbm_to_vmem [thread:$0]  %s195, 1024, %s197, %s184, 256, 256, 16
        $region28: #{tpu_custom_call.1} parent=23 // pred_fallthru
          _
      $region24: #{tpu_custom_call.1} parent=5 // pred_fallthru
        _
      %p203 = scmp.le.s32.totalorder 1, %s17
      %p204 = scmp.lt.s32.totalorder %s17, 3
      %p205 = pnand %p203, %p204
      %p206 = pneg %p205
      // Predicated region
      $region29: #{tpu_custom_call.1} parent=5 // pred_check
        _
      $region30: #{tpu_custom_call.1} parent=5 // pred_check_branch
        %208 = sbr.rel (%p205) target = $region32
      $region31: #{tpu_custom_call.1} parent=5 // pred_region
        %s209 = ssub.s32 %s17, 1
        %s210 = sand.u32 %s44, 1
        %s211 = scalar_lea.sflag [#allocation3], %s210
        %s212 = sand.u32 %s44, 1
        %s213 = smul.addr %s212, 64
        %s214 = scalar_lea.vmem [#allocation2], %s213
        // Predicated region
        $region33: #{tpu_custom_call.1} parent=31 // pred_check
          %p215 = pneg %p57
        $region34: #{tpu_custom_call.1} parent=31 // pred_check_branch
          %217 = sbr.rel (%p215) target = $region36
        $region35: #{tpu_custom_call.1} parent=31 // pred_region
          %218 = dma.done %s211, 1024
        $region36: #{tpu_custom_call.1} parent=31 // pred_fallthru
          _
        %s219 = sand.u32 %s44, 1
        %s220 = scalar_lea.sflag [#allocation3], %s219
        %s221 = sand.u32 %s44, 1
        %s222 = smul.addr %s221, 64
        %s223 = scalar_lea.vmem [#allocation2], %s222
        %p224 = pneg %p57
        %p225 = pneg %p54
        %p226 = pneg %p78
        %p227 = pneg %p75
        %p228 = pneg %p99
        %p229 = pneg %p96
        %p230 = pneg %p127
        %p231 = pneg %p124
        %s232 = sand.u32 %s114, 1
        %s233 = scalar_lea.sflag [#allocation4], %s232
        %s234 = sand.u32 %s114, 1
        %s235 = smul.addr %s234, 2
        %s236 = scalar_lea.vmem [#allocation5], %s235
        %p237 = pneg %p155
        %p238 = pneg %p152
        %s239 = smul.u32 2, %s27
        %p240 = scmp.lt.s32.totalorder %s26, 1
        %s241 = scalar_select %p240, %s26, 1
        %p242 = scmp.lt.s32.totalorder %s239, 1
        %s243 = scalar_select %p242, %s239, 1
        %s244 = smul.addr %s241, 2
        %s245 = sadd.s32 %s243, %s244
        %s246 = smul.addr %s245, 8
        %s247 = scalar_lea.vmem %s4, %s246
        %s248 = smul.u32 2, %s27
        %s249 = smul.u32 2, %s27
        %s250 = smul.u32 2, %s27
        %p251 = scmp.lt.s32.totalorder %s26, 1
        %s252 = scalar_select %p251, %s26, 1
        %p253 = scmp.lt.s32.totalorder %s250, 1
        %s254 = scalar_select %p253, %s250, 1
        %s255 = smul.addr %s252, 2
        %s256 = sadd.s32 %s254, %s255
        %s257 = smul.addr %s256, 8
        %s258 = scalar_lea.vmem %s4, %s257
        %s259 = smul.u32 2, %s27
        %v260 = vld [vmem:[%s214] sm:$0xff]
        %v261 = vld [vmem:[%s214 + $0x8] sm:$0xff]
        %v262 = vld [vmem:[%s214 + $0x10] sm:$0xff]
        %v263 = vld [vmem:[%s214 + $0x18] sm:$0xff]
        %v264 = vld [vmem:[%s214 + $0x20] sm:$0xff]
        %v265 = vld [vmem:[%s214 + $0x28] sm:$0xff]
        %v266 = vld [vmem:[%s214 + $0x30] sm:$0xff]
        %v267 = vld [vmem:[%s214 + $0x38] sm:$0xff]
        %v268 = vld [vmem:[%s1] sm:$0x3f]
        %v269 = vld [vmem:[%s2] sm:$0x3f]
        %271 = vset.pattern.permute.xlu0 0
        %272 = vperm.xlu0 %271, %v269
        %v273 = vpop.permute.xlu0 %272
        %vm275 = vcmask 261120
        %v277 = vsel %vm275, %v268, 0
        %279 = vmatprep.subr.mxu0 %v261
        %280 = vmatpush1.msra.mxu0 %v260
        %281 = vmatprep.subr.mxu0 %v263
        %282 = vmatpush1.msra.mxu0 %v262
        %283 = vmatprep.subr.mxu0 %v265
        %284 = vmatpush1.msra.mxu0 %v264
        %285 = vmatprep.subr.mxu0 %v267
        %286 = vmatpush1.msra.mxu0 %v266
        %287 = vmatprep.subr.mxu0 0.0
        %288 = vmatpush1.msra.mxu0 0.0
        %289 = vmatprep.subr.mxu0 0.0
        %290 = vmatpush1.msra.mxu0 0.0
        %291 = vmatprep.subr.mxu0 0.0
        %292 = vmatpush1.msra.mxu0 0.0
        %293 = vmatprep.subr.mxu0 0.0
        %294 = vmatpush1.msra.mxu0 0.0
        %295 = vmatprep.subr.mxu0 0.0
        %296 = vmatpush1.msra.mxu0 0.0
        %297 = vmatprep.subr.mxu0 0.0
        %298 = vmatpush1.msra.mxu0 0.0
        %299 = vmatprep.subr.mxu0 0.0
        %300 = vmatpush1.msra.mxu0 0.0
        %301 = vmatprep.subr.mxu0 0.0
        %302 = vmatpush1.msra.mxu0 0.0
        %303 = vmatprep.subr.mxu0 0.0
        %304 = vmatpush1.msra.mxu0 0.0
        %305 = vmatprep.subr.mxu0 0.0
        %306 = vmatpush1.msra.mxu0 0.0
        %307 = vmatprep.subr.mxu0 0.0
        %308 = vmatpush1.msra.mxu0 0.0
        %309 = vmatprep.subr.mxu0 0.0
        %310 = vmatpush1.msra.mxu0 0.0
        %311 = vmatprep.subr.mxu0 0.0
        %312 = vmatpush1.msra.mxu0 0.0
        %313 = vmatprep.subr.mxu0 0.0
        %314 = vmatpush1.msra.mxu0 0.0
        %315 = vmatprep.subr.mxu0 0.0
        %316 = vmatpush1.msra.mxu0 0.0
        %317 = vmatprep.subr.mxu0 0.0
        %318 = vmatpush1.msra.mxu0 0.0
        %319 = vmatprep.subr.mxu0 0.0
        %320 = vmatpush1.msra.mxu0 0.0
        %321 = vmatprep.subr.mxu0 0.0
        %322 = vmatpush1.msra.mxu0 0.0
        %323 = vmatprep.subr.mxu0 0.0
        %324 = vmatpush1.msra.mxu0 0.0
        %325 = vmatprep.subr.mxu0 0.0
        %326 = vmatpush1.msra.mxu0 0.0
        %327 = vmatprep.subr.mxu0 0.0
        %328 = vmatpush1.msra.mxu0 0.0
        %329 = vmatprep.subr.mxu0 0.0
        %330 = vmatpush1.msra.mxu0 0.0
        %331 = vmatprep.subr.mxu0 0.0
        %332 = vmatpush1.msra.mxu0 0.0
        %333 = vmatprep.subr.mxu0 0.0
        %334 = vmatpush1.msra.mxu0 0.0
        %335 = vmatprep.subr.mxu0 0.0
        %336 = vmatpush1.msra.mxu0 0.0
        %337 = vmatprep.subr.mxu0 0.0
        %338 = vmatpush1.msra.mxu0 0.0
        %339 = vmatprep.subr.mxu0 0.0
        %340 = vmatpush1.msra.mxu0 0.0
        %341 = vmatprep.subr.mxu0 0.0
        %342 = vmatpush1.msra.mxu0 0.0
        %343 = vmatprep.mubr.f32.mxu0 0.0
        %344 = vmatmul.mubr.f32.gmra.mrb[0].mxu0 %v277
        %v345 = vpop.f32.mrb[0].mxu0
        %v346 = vadd.f32 %v273, %v345
        %v347 = vpop.f32.mrb[0].mxu0
        %v348 = vadd.f32 %v273, %v347
        %349 = vdwg.mxu0
        %v350 = vxor.u32 %v346, 2147483648
        %v351 = vxor.u32 %v348, 2147483648
        %v352 = vmul.f32 %v350, 1.442695
        %v353 = vpow.pop %v352
        %v354 = vmul.f32 %v351, 1.442695
        %v355 = vpow.pop %v354
        %v356 = vadd.f32 %v353, 1.0
        %v357 = vadd.f32 %v355, 1.0
        %v358 = vrcp.pop %v356
        %v359 = vmul.f32 1.0, %v358
        %v360 = vrcp.pop %v357
        %v361 = vmul.f32 1.0, %v360
        %v364 = vcombine.low %v359, %v361
        %v366 = vunpack.c.l.s4 1966171168
        %v367 = vunpack.c.0.s8 %v366
        %v368 = vlaneseq
        %v369 = vshrl.u32 %v368, 7
        %v370 = vsub.s32 %v367, %v369
        %v371 = vrot.slane %v364, %v370
        %v373 = vunpack.c.l.s4 1966171168
        %v374 = vunpack.c.0.s8 %v373
        %v375 = vlaneseq
        %v376 = vshrl.u32 %v375, 7
        %v377 = vsub.s32 %v374, %v376
        %v378 = vrot.slane %v371, %v377
        %v380 = vlaneseq
        %vm381 = vcmp.ge.s32.totalorder %v380, 0
        %vm382 = vcmp.lt.s32.totalorder %v380, 256
        %vm383 = vmand %vm381, %vm382
        %384 = vst.msk [vmem:[%s236] sm:$0x3] %vm383, %v378
        %v385 = vrot.slane %v268, 1
        %v386 = vrot.slane %v273, 1
        %v388 = vsel %vm275, %v385, 0
        %390 = vmatprep.subr.mxu0 %v261
        %391 = vmatpush1.msra.mxu0 %v260
        %392 = vmatprep.subr.mxu0 %v263
        %393 = vmatpush1.msra.mxu0 %v262
        %394 = vmatprep.subr.mxu0 %v265
        %395 = vmatpush1.msra.mxu0 %v264
        %396 = vmatprep.subr.mxu0 %v267
        %397 = vmatpush1.msra.mxu0 %v266
        %398 = vmatprep.subr.mxu0 0.0
        %399 = vmatpush1.msra.mxu0 0.0
        %400 = vmatprep.subr.mxu0 0.0
        %401 = vmatpush1.msra.mxu0 0.0
        %402 = vmatprep.subr.mxu0 0.0
        %403 = vmatpush1.msra.mxu0 0.0
        %404 = vmatprep.subr.mxu0 0.0
        %405 = vmatpush1.msra.mxu0 0.0
        %406 = vmatprep.subr.mxu0 0.0
        %407 = vmatpush1.msra.mxu0 0.0
        %408 = vmatprep.subr.mxu0 0.0
        %409 = vmatpush1.msra.mxu0 0.0
        %410 = vmatprep.subr.mxu0 0.0
        %411 = vmatpush1.msra.mxu0 0.0
        %412 = vmatprep.subr.mxu0 0.0
        %413 = vmatpush1.msra.mxu0 0.0
        %414 = vmatprep.subr.mxu0 0.0
        %415 = vmatpush1.msra.mxu0 0.0
        %416 = vmatprep.subr.mxu0 0.0
        %417 = vmatpush1.msra.mxu0 0.0
        %418 = vmatprep.subr.mxu0 0.0
        %419 = vmatpush1.msra.mxu0 0.0
        %420 = vmatprep.subr.mxu0 0.0
        %421 = vmatpush1.msra.mxu0 0.0
        %422 = vmatprep.subr.mxu0 0.0
        %423 = vmatpush1.msra.mxu0 0.0
        %424 = vmatprep.subr.mxu0 0.0
        %425 = vmatpush1.msra.mxu0 0.0
        %426 = vmatprep.subr.mxu0 0.0
        %427 = vmatpush1.msra.mxu0 0.0
        %428 = vmatprep.subr.mxu0 0.0
        %429 = vmatpush1.msra.mxu0 0.0
        %430 = vmatprep.subr.mxu0 0.0
        %431 = vmatpush1.msra.mxu0 0.0
        %432 = vmatprep.subr.mxu0 0.0
        %433 = vmatpush1.msra.mxu0 0.0
        %434 = vmatprep.subr.mxu0 0.0
        %435 = vmatpush1.msra.mxu0 0.0
        %436 = vmatprep.subr.mxu0 0.0
        %437 = vmatpush1.msra.mxu0 0.0
        %438 = vmatprep.subr.mxu0 0.0
        %439 = vmatpush1.msra.mxu0 0.0
        %440 = vmatprep.subr.mxu0 0.0
        %441 = vmatpush1.msra.mxu0 0.0
        %442 = vmatprep.subr.mxu0 0.0
        %443 = vmatpush1.msra.mxu0 0.0
        %444 = vmatprep.subr.mxu0 0.0
        %445 = vmatpush1.msra.mxu0 0.0
        %446 = vmatprep.subr.mxu0 0.0
        %447 = vmatpush1.msra.mxu0 0.0
        %448 = vmatprep.subr.mxu0 0.0
        %449 = vmatpush1.msra.mxu0 0.0
        %450 = vmatprep.subr.mxu0 0.0
        %451 = vmatpush1.msra.mxu0 0.0
        %452 = vmatprep.subr.mxu0 0.0
        %453 = vmatpush1.msra.mxu0 0.0
        %454 = vmatprep.mubr.f32.mxu0 0.0
        %455 = vmatmul.mubr.f32.gmra.mrb[0].mxu0 %v388
        %v456 = vpop.f32.mrb[0].mxu0
        %v457 = vadd.f32 %v386, %v456
        %v458 = vpop.f32.mrb[0].mxu0
        %v459 = vadd.f32 %v386, %v458
        %460 = vdwg.mxu0
        %v461 = vxor.u32 %v457, 2147483648
        %v462 = vxor.u32 %v459, 2147483648
        %v463 = vmul.f32 %v461, 1.442695
        %v464 = vpow.pop %v463
        %v465 = vmul.f32 %v462, 1.442695
        %v466 = vpow.pop %v465
        %v467 = vadd.f32 %v464, 1.0
        %v468 = vadd.f32 %v466, 1.0
        %v469 = vrcp.pop %v467
        %v470 = vmul.f32 1.0, %v469
        %v471 = vrcp.pop %v468
        %v472 = vmul.f32 1.0, %v471
        %v473 = vlaneseq
        %v474 = vshrl.u32 %v473, 7
        %vm475 = vcmp.eq.s32.totalorder %v474, 4
        %v476 = vsel %vm475, 1.5707964, 512.0
        %v477 = vsel %vm475, -0.7853982, 0.0
        %v478 = vmul.f32 %v470, %v476
        %v479 = vmul.f32 %v472, %v476
        %v480 = vadd.f32 %v478, %v477
        %v481 = vadd.f32 %v479, %v477
        %482 = vst [vmem:[%s258] sm:$0x1f] %v480
        %483 = vst [vmem:[%s258 + $0x8] sm:$0x1f] %v481
        %s484 = sand.u32 %s114, 1
        %s485 = scalar_lea.sflag [#allocation4], %s484
        %s486 = sand.u32 %s114, 1
        %s487 = smul.addr %s486, 2
        %s488 = scalar_lea.vmem [#allocation5], %s487
        %s489 = smul.u32 2, %s27
        %p490 = scmp.lt.s32.totalorder %s26, 1
        %s491 = scalar_select %p490, %s26, 1
        %p492 = scmp.lt.s32.totalorder %s489, 1
        %s493 = scalar_select %p492, %s489, 1
        %s494 = smul.addr %s491, 2
        %s495 = sadd.s32 %s493, %s494
        %s496 = smul.addr %s495, 8
        %s497 = scalar_lea.vmem %s4, %s496
        // Predicated region
        $region37: #{tpu_custom_call.1} parent=31 // pred_check
          %p498 = pneg %p124
        $region38: #{tpu_custom_call.1} parent=31 // pred_check_branch
          %500 = sbr.rel (%p498) target = $region40
        $region39: #{tpu_custom_call.1} parent=31 // pred_region
          %s501 = smul.u32 2, %s27
          %s503 = ssub.s32 32, 32
          %504 = vsyncadd %s485, %s503
          %s505 = smul.addr %s26, 2
          %s506 = sadd.s32 %s501, %s505
          %s507 = smul.addr %s506, 16
          %s508 = scalar_lea.hbm %s3, %s507
          %s510 = sshll.u32 %s488, 4
          %s511 = int_to_ptr.vmem [resolvable:$true] %s510
          %513 = dma.vmem_to_hbm [thread:$0]  %s511, 32, %s508, %s485
        $region40: #{tpu_custom_call.1} parent=31 // pred_fallthru
          _
        // Predicated region
        $region41: #{tpu_custom_call.1} parent=31 // pred_check
          %p514 = pneg %p152
        $region42: #{tpu_custom_call.1} parent=31 // pred_check_branch
          %516 = sbr.rel (%p514) target = $region44
        $region43: #{tpu_custom_call.1} parent=31 // pred_region
          %s517 = smul.u32 2, %s27
        $region44: #{tpu_custom_call.1} parent=31 // pred_fallthru
          _
      $region32: #{tpu_custom_call.1} parent=5 // pred_fallthru
        _
      %p518 = scmp.le.s32.totalorder 2, %s17
      // Predicated region
      $region45: #{tpu_custom_call.1} parent=5 // pred_check
        %p519 = pneg %p518
      $region46: #{tpu_custom_call.1} parent=5 // pred_check_branch
        %521 = sbr.rel (%p519) target = $region48
      $region47: #{tpu_custom_call.1} parent=5 // pred_region
        %s522 = ssub.s32 %s17, 2
        // Predicated region
        $region49: #{tpu_custom_call.1} parent=47 // pred_check
          %p523 = pneg %p130
        $region50: #{tpu_custom_call.1} parent=47 // pred_check_branch
          %525 = sbr.rel (%p523) target = $region52
        $region51: #{tpu_custom_call.1} parent=47 // pred_region
          %s526 = sand.u32 %s115, 1
          %s527 = scalar_lea.sflag [#allocation4], %s526
          %s528 = sand.u32 %s115, 1
          %s529 = smul.addr %s528, 2
          %s530 = scalar_lea.vmem [#allocation5], %s529
          %531 = dma.done %s527, 32
        $region52: #{tpu_custom_call.1} parent=47 // pred_fallthru
          _
        // Predicated region
        $region53: #{tpu_custom_call.1} parent=47 // pred_check
          %p532 = pneg %p158
        $region54: #{tpu_custom_call.1} parent=47 // pred_check_branch
          %534 = sbr.rel (%p532) target = $region56
        $region55: #{tpu_custom_call.1} parent=47 // pred_region
          %s535 = smul.u32 2, %s29
          %p536 = scmp.lt.s32.totalorder %s28, 1
          %s537 = scalar_select %p536, %s28, 1
          %p538 = scmp.lt.s32.totalorder %s535, 1
          %s539 = scalar_select %p538, %s535, 1
          %s540 = smul.addr %s537, 2
          %s541 = sadd.s32 %s539, %s540
          %s542 = smul.addr %s541, 8
          %s543 = scalar_lea.vmem %s4, %s542
        $region56: #{tpu_custom_call.1} parent=47 // pred_fallthru
          _
      $region48: #{tpu_custom_call.1} parent=5 // pred_fallthru
        _
    $region6: #{tpu_custom_call.1} parent=1 // loop_footer
      %s21 = sadd.s32 1, %s17
    $region7: #{tpu_custom_call.1} parent=1 // loop_footer_branch
      %16 = sbr.rel target = $region3
    $region8: #{tpu_custom_call.1} parent=1 // loop_exit
      _
    %544 = vsyncpa [#allocation3], 1
    %s545 = scalar_lea.sflag [#allocation3], 1
    %546 = vsyncpa %s545, 1
    %547 = vsyncpa [#allocation4], 1
    %s548 = scalar_lea.sflag [#allocation4], 1
    %549 = vsyncpa %s548, 1

</llo_original>
